<compile_context>
chip_gen: v7x
topology: tpu7x:2x2x1
jax: 0.10.0
libtpu: 0.0.40
codegen_flags: <defaults>
</compile_context>

<pallas_src>
import functools

import jax
import jax.numpy as jnp
from jax.experimental import pallas as pl
from jax.experimental.pallas import tpu as pltpu


def _geo_gat_kernel(s_src_ref, s_dst_ref, xjt_ref, adjb_ref, bias_ref, out_ref, *,
                    heads_per_block, negative_slope, fast):
    """One (head-block, source-tile) step.

    Orientation: source nodes on sublane rows, destination nodes on the lane axis,
    so the per-source softmax reduces over lanes and the accumulator / MXU output
    (C, N_pad) is lane-dense (unmasked full-width stores).
    """
    # Initialize the resident accumulator with the bias on the first source tile.
    @pl.when(pl.program_id(1) == 0)
    def _init():
        out_ref[...] = jnp.broadcast_to(bias_ref[...], out_ref.shape)

    cdt = jnp.bfloat16 if fast else jnp.float32   # bf16 elementwise chain (v6e/v7x win)

    for h in range(heads_per_block):               # heads: small & static -> unrolled
        s_j = s_src_ref[h].astype(cdt)             # (tS, 1)      source logits (rows)
        s_i = s_dst_ref[h].astype(cdt)             # (1, N_pad)   target logits (lanes)
        scores = s_j + s_i                         # (tS, N_pad)  dense per-edge logits
        # leaky_relu with 2 VALU ops (valid for 0 < slope < 1)
        scores = jnp.maximum(scores, negative_slope * scores)
        # additive bf16 mask added directly: non-edges -> ~-1e30 (no hoisted f32 cast)
        masked = scores + adjb_ref[...]
        # softmax grouped by SOURCE node == per-row softmax over destination lanes
        m = jnp.max(masked, axis=-1, keepdims=True)            # (tS, 1)
        e = jnp.exp(masked - m)
        # keep the denominator accumulation in f32 (avoids bf16 drift for high degree)
        denom = jnp.sum(e.astype(jnp.float32), axis=-1, keepdims=True) + 1e-16
        if fast:
            inv = pl.reciprocal(denom, approx=True).astype(jnp.bfloat16)   # (tS, 1)
            alpha = e * inv
        else:
            alpha = e / denom
        # scatter_add over destinations == dense matmul; lane-dense (C, N_pad) output,
        # f32 accumulation on the MXU.
        out_ref[h] += jnp.dot(xjt_ref[h], alpha.astype(xjt_ref.dtype),
                              preferred_element_type=jnp.float32)


def _pick_vmem_limit():
    """Per-generation VMEM budget: ~3/4 of physical capacity, capped at 100 MiB."""
    try:
        cap = pltpu.get_tpu_info().vmem_capacity_bytes
        return int(min(100 * 1024 * 1024, (cap * 3) // 4))
    except Exception:
        return 48 * 1024 * 1024     # safe fallback on every generation (v7x = 64 MiB)


def geo_layer_forward(x, edge_index, weight, att, bias, *, heads, out_channels,
                      negative_slope=0.2, src_tile=256, fast=True,
                      head_parallel=False):
    """GeoLayer.forward for att_type='gat', agg_type='sum', concat=True, eval mode.

    head_parallel=True adds a leading "parallel" grid axis over heads (use on v7x,
    2 TensorCores); default False keeps heads unrolled so the O(N^2) adjacency is
    read from HBM exactly once (optimal on single-TC v5e/v6e).
    """
    n = x.shape[0]
    c = out_channels
    assert src_tile % 128 == 0, "source tile must be a multiple of 128 lanes"
    ts = src_tile
    n_pad = ((n + ts - 1) // ts) * ts
    pad = n_pad - n
    mxu_dtype = jnp.bfloat16 if fast else jnp.float32

    # ---- wrapper-side glue (cheap O(N·H·C) XLA work, hoisted out of the tile loop) --
    xw = x.astype(jnp.float32) @ weight.astype(jnp.float32)        # (N, H*C)
    xw3 = xw.reshape(n, heads, c)
    att_l = att[0, :, :c]                                          # pairs with x_i (dst)
    att_r = att[0, :, c:]                                          # pairs with x_j (src)
    s_dst = jnp.swapaxes(jnp.sum(xw3 * att_l[None, :, :], axis=-1), 0, 1)   # (H, N)
    s_src = jnp.swapaxes(jnp.sum(xw3 * att_r[None, :, :], axis=-1), 0, 1)   # (H, N)

    # head-major, channel-major source features so the kernel accumulator is
    # lane-dense over destinations: xjT[h, c, src]
    xjt = jnp.transpose(xw3, (1, 2, 0)).astype(mxu_dtype)          # (H, C, N)
    xjt = jnp.pad(xjt, ((0, 0), (0, 0), (0, pad)))                 # zero src cols
    s_src_p = jnp.pad(s_src, ((0, 0), (0, pad)))[:, :, None]       # (H, N_pad, 1) rows
    s_dst_p = jnp.pad(s_dst, ((0, 0), (0, pad)))[:, None, :]       # (H, 1, N_pad) lanes
    bias3 = bias.reshape(heads, c, 1).astype(jnp.float32)          # (H, C, 1)

    # Dense additive adjacency bias adj_bias[src, dst]: 0 if edge src->dst, else -1e30.
    # Built directly in bf16 with scatters (no dense f32 intermediate).
    # remove_self_loops + add_self_loops collapse to "diagonal is an edge" in dense form.
    src_idx, dst_idx = edge_index[0], edge_index[1]
    adj_bias = jnp.full((n_pad, n_pad), -1e30, jnp.bfloat16)
    adj_bias = adj_bias.at[src_idx, dst_idx].set(0.0)
    diag = jnp.arange(n)
    adj_bias = adj_bias.at[diag, diag].set(0.0)
    # Padded source rows are fully masked (uniform softmax × zero x_j cols -> 0);
    # padded destination lanes are fully masked and sliced away in the epilogue.

    hb = 1 if head_parallel else heads             # heads per grid step
    n_h_grid = heads // hb
    kernel = functools.partial(_geo_gat_kernel, heads_per_block=hb,
                               negative_slope=negative_slope, fast=fast)

    out = pl.pallas_call(
        kernel,
        grid=(n_h_grid, n_pad // ts),
        in_specs=[
            pl.BlockSpec((hb, ts, 1),    lambda h, s: (h, s, 0)),   # s_src (S tile rows)
            pl.BlockSpec((hb, 1, n_pad), lambda h, s: (h, 0, 0)),   # s_dst (resident lanes)
            pl.BlockSpec((hb, c, ts),    lambda h, s: (h, 0, s)),   # xjT feats (S tile)
            pl.BlockSpec((ts, n_pad),    lambda h, s: (s, 0)),      # adjacency [src, dst]
            pl.BlockSpec((hb, c, 1),     lambda h, s: (h, 0, 0)),   # bias (resident)
        ],
        out_specs=pl.BlockSpec((hb, c, n_pad), lambda h, s: (h, 0, 0)),  # accumulator
        out_shape=jax.ShapeDtypeStruct((heads, c, n_pad), jnp.float32),
        compiler_params=pltpu.CompilerParams(
            dimension_semantics=("parallel", "arbitrary"),   # accumulate over S tiles
            vmem_limit_bytes=_pick_vmem_limit()),
    )(s_src_p, s_dst_p, xjt, adj_bias, bias3)

    # (H, C, N_pad) -> (N, H*C)   (concat=True) — cheap XLA layout epilogue.
    out = jnp.transpose(out, (2, 0, 1))[:n].reshape(n, heads * c)
    return out.astype(x.dtype)


def _ref_forward(x, edge_index, weight, att, bias, heads, out_channels, slope):
    """Pure-JAX edge-list reference mirroring the PyTorch GeoLayer semantics."""
    n = x.shape[0]
    loop = jnp.arange(n, dtype=edge_index.dtype)
    src = jnp.concatenate([edge_index[0], loop])
    dst = jnp.concatenate([edge_index[1], loop])
    xw = (x @ weight).reshape(n, heads, out_channels)
    x_i = xw[dst]                                   # targets  (edge_index[1])
    x_j = xw[src]                                   # sources  (edge_index[0])
    att_l = att[0, :, :out_channels]
    att_r = att[0, :, out_channels:]
    alpha = (x_i * att_l).sum(-1) + (x_j * att_r).sum(-1)          # (E, H)
    alpha = jnp.where(alpha >= 0, alpha, slope * alpha)
    amax = jax.ops.segment_max(alpha, src, num_segments=n)
    alpha = jnp.exp(alpha - amax[src])
    denom = jax.ops.segment_sum(alpha, src, num_segments=n)
    alpha = alpha / (denom[src] + 1e-16)
    msg = x_j * alpha[:, :, None]
    out = jax.ops.segment_sum(msg, dst, num_segments=n)
    return out.reshape(n, heads * out_channels) + bias


if __name__ == "__main__":
    HEADS, C, F_IN = 2, 16, 8

    key = jax.random.PRNGKey(0)
    k_x1, k_x2, k_w, k_a = jax.random.split(key, 4)

    # deterministic parameter init mimicking reset_parameters(): glorot + zero bias
    lim_w = (6.0 / (F_IN + HEADS * C)) ** 0.5
    weight = jax.random.uniform(k_w, (F_IN, HEADS * C), jnp.float32, -lim_w, lim_w)
    lim_a = (6.0 / (HEADS + 2 * C)) ** 0.5
    att = jax.random.uniform(k_a, (1, HEADS, 2 * C), jnp.float32, -lim_a, lim_a)
    bias = jnp.zeros((HEADS * C,), jnp.float32)

    def ring_plus_chords(n, chord):
        # bidirectional ring + one forward chord per node; no self-loops, no duplicates
        s = jnp.arange(n, dtype=jnp.int32)
        e_src = jnp.concatenate([s, (s + 1) % n, s])
        e_dst = jnp.concatenate([(s + 1) % n, s, (s + chord) % n])
        return jnp.stack([e_src, e_dst])

    # Test 1: single source tile (N=16 padded to one 128-wide tile).
    x1 = jax.random.normal(k_x1, (16, F_IN), jnp.float32)
    e1 = ring_plus_chords(16, 5)
    # Test 2: multi-tile grid (N=200 -> two 128-row source tiles) exercising the
    # resident-accumulator path across grid steps.
    x2 = jax.random.normal(k_x2, (200, F_IN), jnp.float32)
    e2 = ring_plus_chords(200, 7)

    for x, ei in ((x1, e1), (x2, e2)):
        ref = _ref_forward(x, ei, weight, att, bias, HEADS, C, 0.2)

        # exact path (f32 chain, exact divide) -> tight check vs edge-list reference
        out_exact = jax.block_until_ready(
            geo_layer_forward(x, ei, weight, att, bias, heads=HEADS, out_channels=C,
                              src_tile=128, fast=False, head_parallel=False))
        assert out_exact.shape == (x.shape[0], HEADS * C)
        assert jnp.allclose(out_exact, ref, atol=1e-4, rtol=1e-4), "exact path mismatch"

        # v7x-style head-parallel grid (functionally identical; uses 2nd TC on v7x)
        out_hp = jax.block_until_ready(
            geo_layer_forward(x, ei, weight, att, bias, heads=HEADS, out_channels=C,
                              src_tile=128, fast=False, head_parallel=True))
        assert jnp.allclose(out_hp, ref, atol=1e-4, rtol=1e-4), "head-parallel mismatch"

        # fast path (bf16 elementwise chain + bf16 MXU inputs + approx reciprocal):
        # looser tolerance by design
        out_fast = jax.block_until_ready(
            geo_layer_forward(x, ei, weight, att, bias, heads=HEADS, out_channels=C,
                              src_tile=128, fast=True, head_parallel=False))
        assert jnp.allclose(out_fast, ref, atol=7e-2, rtol=5e-2), "fast path mismatch"

    print("KERNEL_OK")
</pallas_src>

<mosaic_0001>
module attributes {stable_mosaic.version = 11 : i64} {
  func.func @_geo_gat_kernel(%arg0: i32, %arg1: i32, %arg2: memref<2x128x1xf32, #tpu.memory_space<vmem>>, %arg3: memref<2x1x128xf32, #tpu.memory_space<vmem>>, %arg4: memref<2x16x128xf32, #tpu.memory_space<vmem>>, %arg5: memref<128x128xbf16, #tpu.memory_space<vmem>>, %arg6: memref<2x16x1xf32, #tpu.memory_space<vmem>>, %arg7: memref<2x16x128xf32, #tpu.memory_space<vmem>>) attributes {dimension_semantics = [#tpu.dimension_semantics<parallel>, #tpu.dimension_semantics<arbitrary>], iteration_bounds = array<i64: 1, 1>, scalar_prefetch = 0 : i64, scratch_operands = 0 : i64, tpu.core_type = #tpu.core_type<tc>, window_params = [{transform_indices = @transform_0, window_bounds = array<i64: 2, 128, 1>}, {transform_indices = @transform_1, window_bounds = array<i64: 2, 1, 128>}, {transform_indices = @transform_2, window_bounds = array<i64: 2, 16, 128>}, {transform_indices = @transform_3, window_bounds = array<i64: 128, 128>}, {transform_indices = @transform_4, window_bounds = array<i64: 2, 16, 1>}, {transform_indices = @transform_5, window_bounds = array<i64: 2, 16, 128>}]} {
    %c0_i32 = arith.constant 0 : i32
    %0 = arith.cmpi eq, %arg1, %c0_i32 : i32
    %1 = arith.extui %0 : i1 to i32
    %c0_i32_0 = arith.constant 0 : i32
    %2 = arith.cmpi ne, %1, %c0_i32_0 : i32
    scf.if %2 {
      %c0_42 = arith.constant 0 : index
      %c0_43 = arith.constant 0 : index
      %c0_44 = arith.constant 0 : index
      %69 = vector.load %arg6[%c0_42, %c0_43, %c0_44] : memref<2x16x1xf32, #tpu.memory_space<vmem>>, vector<2x16x1xf32>
      %70 = vector.shape_cast %69 : vector<2x16x1xf32> to vector<2x16x1xf32>
      %71 = vector.broadcast %70 : vector<2x16x1xf32> to vector<2x16x128xf32>
      %c0_45 = arith.constant 0 : index
      %c0_46 = arith.constant 0 : index
      %c0_47 = arith.constant 0 : index
      %72 = vector.load %arg7[%c0_45, %c0_46, %c0_47] : memref<2x16x128xf32, #tpu.memory_space<vmem>>, vector<2x16x128xf32>
      tpu.vector_store %arg7[%c0_45, %c0_46, %c0_47], %71 {strides = array<i32>} : memref<2x16x128xf32, #tpu.memory_space<vmem>>, vector<2x16x128xf32>,
    } else {
    }
    %c0 = arith.constant 0 : index
    %c0_1 = arith.constant 0 : index
    %c0_2 = arith.constant 0 : index
    %3 = vector.load %arg2[%c0, %c0_1, %c0_2] : memref<2x128x1xf32, #tpu.memory_space<vmem>>, vector<1x128x1xf32>
    %4 = vector.shape_cast %3 : vector<1x128x1xf32> to vector<128x1xf32>
    %c0_3 = arith.constant 0 : index
    %c0_4 = arith.constant 0 : index
    %c0_5 = arith.constant 0 : index
    %5 = vector.load %arg3[%c0_3, %c0_4, %c0_5] : memref<2x1x128xf32, #tpu.memory_space<vmem>>, vector<1x1x128xf32>
    %6 = vector.shape_cast %5 : vector<1x1x128xf32> to vector<1x128xf32>
    %7 = vector.broadcast %4 : vector<128x1xf32> to vector<128x128xf32>
    %8 = vector.broadcast %6 : vector<1x128xf32> to vector<128x128xf32>
    %9 = arith.addf %7, %8 : vector<128x128xf32>
    %cst = arith.constant 2.000000e-01 : f32
    %10 = vector.broadcast %cst : f32 to vector<128x128xf32>
    %11 = arith.mulf %10, %9 : vector<128x128xf32>
    %12 = arith.maximumf %9, %11 : vector<128x128xf32>
    %c0_6 = arith.constant 0 : index
    %c0_7 = arith.constant 0 : index
    %13 = vector.load %arg5[%c0_6, %c0_7] : memref<128x128xbf16, #tpu.memory_space<vmem>>, vector<128x128xbf16>
    %14 = arith.extf %13 : vector<128x128xbf16> to vector<128x128xf32>
    %15 = arith.addf %12, %14 : vector<128x128xf32>
    %cst_8 = arith.constant dense<0xFF800000> : vector<128xf32>
    %16 = vector.multi_reduction <maximumf>, %15, %cst_8 [1] : vector<128x128xf32> to vector<128xf32>
    %17 = vector.shape_cast %16 : vector<128xf32> to vector<128x1xf32>
    %18 = vector.broadcast %17 : vector<128x1xf32> to vector<128x128xf32>
    %19 = arith.subf %15, %18 : vector<128x128xf32>
    %20 = math.exp %19 : vector<128x128xf32>
    %cst_9 = arith.constant dense<0.000000e+00> : vector<128xf32>
    %21 = vector.multi_reduction <add>, %20, %cst_9 [1] : vector<128x128xf32> to vector<128xf32>
    %22 = vector.shape_cast %21 : vector<128xf32> to vector<128x1xf32>
    %cst_10 = arith.constant 1.000000e-16 : f32
    %23 = vector.broadcast %cst_10 : f32 to vector<128x1xf32>
    %24 = arith.addf %22, %23 : vector<128x1xf32>
    %25 = vector.broadcast %24 : vector<128x1xf32> to vector<128x128xf32>
    %26 = arith.divf %20, %25 : vector<128x128xf32>
    %c0_11 = arith.constant 0 : index
    %c0_12 = arith.constant 0 : index
    %c0_13 = arith.constant 0 : index
    %27 = vector.load %arg7[%c0_11, %c0_12, %c0_13] : memref<2x16x128xf32, #tpu.memory_space<vmem>>, vector<1x16x128xf32>
    %28 = vector.shape_cast %27 : vector<1x16x128xf32> to vector<16x128xf32>
    %c0_14 = arith.constant 0 : index
    %c0_15 = arith.constant 0 : index
    %c0_16 = arith.constant 0 : index
    %29 = vector.load %arg4[%c0_14, %c0_15, %c0_16] : memref<2x16x128xf32, #tpu.memory_space<vmem>>, vector<1x16x128xf32>
    %30 = vector.shape_cast %29 : vector<1x16x128xf32> to vector<16x128xf32>
    %cst_17 = arith.constant dense<0.000000e+00> : vector<16x128xf32>
    %31 = tpu.matmul %30, %26, %cst_17 {dimension_numbers = #tpu.dot_dimension_numbers<[1], [0], [0], [1], [0, 0, 1, 1], [], []>} : vector<16x128xf32>, vector<128x128xf32>, vector<16x128xf32> -> vector<16x128xf32>
    %32 = arith.addf %28, %31 : vector<16x128xf32>
    %c0_18 = arith.constant 0 : index
    %c0_19 = arith.constant 0 : index
    %c0_20 = arith.constant 0 : index
    %33 = vector.load %arg7[%c0_18, %c0_19, %c0_20] : memref<2x16x128xf32, #tpu.memory_space<vmem>>, vector<1x16x128xf32>
    %34 = vector.shape_cast %33 : vector<1x16x128xf32> to vector<16x128xf32>
    %35 = vector.shape_cast %32 : vector<16x128xf32> to vector<1x16x128xf32>
    tpu.vector_store %arg7[%c0_18, %c0_19, %c0_20], %35 {strides = array<i32>} : memref<2x16x128xf32, #tpu.memory_space<vmem>>, vector<1x16x128xf32>,
    %c1 = arith.constant 1 : index
    %c0_21 = arith.constant 0 : index
    %c0_22 = arith.constant 0 : index
    %36 = vector.load %arg2[%c1, %c0_21, %c0_22] : memref<2x128x1xf32, #tpu.memory_space<vmem>>, vector<1x128x1xf32>
    %37 = vector.shape_cast %36 : vector<1x128x1xf32> to vector<128x1xf32>
    %c1_23 = arith.constant 1 : index
    %c0_24 = arith.constant 0 : index
    %c0_25 = arith.constant 0 : index
    %38 = vector.load %arg3[%c1_23, %c0_24, %c0_25] : memref<2x1x128xf32, #tpu.memory_space<vmem>>, vector<1x1x128xf32>
    %39 = vector.shape_cast %38 : vector<1x1x128xf32> to vector<1x128xf32>
    %40 = vector.broadcast %37 : vector<128x1xf32> to vector<128x128xf32>
    %41 = vector.broadcast %39 : vector<1x128xf32> to vector<128x128xf32>
    %42 = arith.addf %40, %41 : vector<128x128xf32>
    %cst_26 = arith.constant 2.000000e-01 : f32
    %43 = vector.broadcast %cst_26 : f32 to vector<128x128xf32>
    %44 = arith.mulf %43, %42 : vector<128x128xf32>
    %45 = arith.maximumf %42, %44 : vector<128x128xf32>
    %c0_27 = arith.constant 0 : index
    %c0_28 = arith.constant 0 : index
    %46 = vector.load %arg5[%c0_27, %c0_28] : memref<128x128xbf16, #tpu.memory_space<vmem>>, vector<128x128xbf16>
    %47 = arith.extf %46 : vector<128x128xbf16> to vector<128x128xf32>
    %48 = arith.addf %45, %47 : vector<128x128xf32>
    %cst_29 = arith.constant dense<0xFF800000> : vector<128xf32>
    %49 = vector.multi_reduction <maximumf>, %48, %cst_29 [1] : vector<128x128xf32> to vector<128xf32>
    %50 = vector.shape_cast %49 : vector<128xf32> to vector<128x1xf32>
    %51 = vector.broadcast %50 : vector<128x1xf32> to vector<128x128xf32>
    %52 = arith.subf %48, %51 : vector<128x128xf32>
    %53 = math.exp %52 : vector<128x128xf32>
    %cst_30 = arith.constant dense<0.000000e+00> : vector<128xf32>
    %54 = vector.multi_reduction <add>, %53, %cst_30 [1] : vector<128x128xf32> to vector<128xf32>
    %55 = vector.shape_cast %54 : vector<128xf32> to vector<128x1xf32>
    %cst_31 = arith.constant 1.000000e-16 : f32
    %56 = vector.broadcast %cst_31 : f32 to vector<128x1xf32>
    %57 = arith.addf %55, %56 : vector<128x1xf32>
    %58 = vector.broadcast %57 : vector<128x1xf32> to vector<128x128xf32>
    %59 = arith.divf %53, %58 : vector<128x128xf32>
    %c1_32 = arith.constant 1 : index
    %c0_33 = arith.constant 0 : index
    %c0_34 = arith.constant 0 : index
    %60 = vector.load %arg7[%c1_32, %c0_33, %c0_34] : memref<2x16x128xf32, #tpu.memory_space<vmem>>, vector<1x16x128xf32>
    %61 = vector.shape_cast %60 : vector<1x16x128xf32> to vector<16x128xf32>
    %c1_35 = arith.constant 1 : index
    %c0_36 = arith.constant 0 : index
    %c0_37 = arith.constant 0 : index
    %62 = vector.load %arg4[%c1_35, %c0_36, %c0_37] : memref<2x16x128xf32, #tpu.memory_space<vmem>>, vector<1x16x128xf32>
    %63 = vector.shape_cast %62 : vector<1x16x128xf32> to vector<16x128xf32>
    %cst_38 = arith.constant dense<0.000000e+00> : vector<16x128xf32>
    %64 = tpu.matmul %63, %59, %cst_38 {dimension_numbers = #tpu.dot_dimension_numbers<[1], [0], [0], [1], [0, 0, 1, 1], [], []>} : vector<16x128xf32>, vector<128x128xf32>, vector<16x128xf32> -> vector<16x128xf32>
    %65 = arith.addf %61, %64 : vector<16x128xf32>
    %c1_39 = arith.constant 1 : index
    %c0_40 = arith.constant 0 : index
    %c0_41 = arith.constant 0 : index
    %66 = vector.load %arg7[%c1_39, %c0_40, %c0_41] : memref<2x16x128xf32, #tpu.memory_space<vmem>>, vector<1x16x128xf32>
    %67 = vector.shape_cast %66 : vector<1x16x128xf32> to vector<16x128xf32>
    %68 = vector.shape_cast %65 : vector<16x128xf32> to vector<1x16x128xf32>
    tpu.vector_store %arg7[%c1_39, %c0_40, %c0_41], %68 {strides = array<i32>} : memref<2x16x128xf32, #tpu.memory_space<vmem>>, vector<1x16x128xf32>,
    return
  }
  func.func @transform_0(%arg0: i32, %arg1: i32) -> (i32, i32, i32) {
    %c0_i32 = arith.constant 0 : i32
    %c0_i32_0 = arith.constant 0 : i32
    return %arg0, %arg1, %c0_i32 : i32, i32, i32
  }
  func.func @transform_1(%arg0: i32, %arg1: i32) -> (i32, i32, i32) {
    %c0_i32 = arith.constant 0 : i32
    %c0_i32_0 = arith.constant 0 : i32
    %c0_i32_1 = arith.constant 0 : i32
    return %arg0, %c0_i32, %c0_i32_0 : i32, i32, i32
  }
  func.func @transform_2(%arg0: i32, %arg1: i32) -> (i32, i32, i32) {
    %c0_i32 = arith.constant 0 : i32
    %c0_i32_0 = arith.constant 0 : i32
    return %arg0, %c0_i32, %arg1 : i32, i32, i32
  }
  func.func @transform_3(%arg0: i32, %arg1: i32) -> (i32, i32) {
    %c0_i32 = arith.constant 0 : i32
    %c0_i32_0 = arith.constant 0 : i32
    return %arg1, %c0_i32 : i32, i32
  }
  func.func @transform_4(%arg0: i32, %arg1: i32) -> (i32, i32, i32) {
    %c0_i32 = arith.constant 0 : i32
    %c0_i32_0 = arith.constant 0 : i32
    %c0_i32_1 = arith.constant 0 : i32
    return %arg0, %c0_i32, %c0_i32_0 : i32, i32, i32
  }
  func.func @transform_5(%arg0: i32, %arg1: i32) -> (i32, i32, i32) {
    %c0_i32 = arith.constant 0 : i32
    %c0_i32_0 = arith.constant 0 : i32
    %c0_i32_1 = arith.constant 0 : i32
    return %arg0, %c0_i32, %c0_i32_0 : i32, i32, i32
  }
}

</mosaic_0001>

<llo_original>
// kernel: tpu_custom_call.1
$region0: #{tpu_custom_call.1}
  #allocation0 [shape = 'u32[]', space=smem, size = 0x4, offset = 0x4, fixed_abs, tag = 'smem constant byte address 0x4 - core index']
  #allocation1 [shape = 'u32[144,128]{1,0:T(1,128)}', space=vmem, size = 0x12000, scoped, tag = 'internal scratch']
  %s0 = inlined_call_operand.vmem [shape: f32[2,128,1], index: 0, kind: input, shape index: {}]
  %s1 = inlined_call_operand.vmem [shape: f32[2,1,128], index: 1, kind: input, shape index: {}]
  %s2 = inlined_call_operand.vmem [shape: f32[2,16,128], index: 2, kind: input, shape index: {}]
  %s3 = inlined_call_operand.vmem [shape: bf16[128,128], index: 3, kind: input, shape index: {}]
  %s4 = inlined_call_operand.vmem [shape: f32[2,16,1], index: 4, kind: input, shape index: {}]
  %s5 = inlined_call_operand.hbm [shape: f32[2,16,128], index: 5, kind: output, shape index: {}]
  %s6 = sld [smem:[#allocation0]]
  $region34: #{tpu_custom_call.1} parent=0
    _
  %s8 = ssub.s32 1, %s6
  %s9 = scalar_select 0, %s8, %s6
  $region1: #{tpu_custom_call.1} parent=0
    #allocation2 [shape = 'u8[16384]{0}', space=vmem, size = 0x4000, scoped, tag = 'output window, operand 0, single buffered']
    #allocation3 [shape = 's32[1]{0}', space=sflag, size = 0x4, scoped, tag = 'scoped memory for tpu_custom_call.1']
    %10 = vsyncpa [#allocation3], 0
    // Predicated region
    $region2: #{tpu_custom_call.1} parent=1 // pred_check
      _
    $region3: #{tpu_custom_call.1} parent=1 // pred_check_branch
      %12 = sbr.rel (0) target = $region5
    $region4: #{tpu_custom_call.1} parent=1 // pred_region
      _
    $region5: #{tpu_custom_call.1} parent=1 // pred_fallthru
      _
    // Predicated region
    $region6: #{tpu_custom_call.1} parent=1 // pred_check
      _
    $region7: #{tpu_custom_call.1} parent=1 // pred_check_branch
      %14 = sbr.rel (0) target = $region9
    $region8: #{tpu_custom_call.1} parent=1 // pred_region
      _
    $region9: #{tpu_custom_call.1} parent=1 // pred_fallthru
      _
    // Predicated region
    $region10: #{tpu_custom_call.1} parent=1 // pred_check
      _
    $region11: #{tpu_custom_call.1} parent=1 // pred_check_branch
      %16 = sbr.rel (0) target = $region13
    $region12: #{tpu_custom_call.1} parent=1 // pred_region
      _
    $region13: #{tpu_custom_call.1} parent=1 // pred_fallthru
      _
    // Predicated region
    $region14: #{tpu_custom_call.1} parent=1 // pred_check
      _
    $region15: #{tpu_custom_call.1} parent=1 // pred_check_branch
      %18 = sbr.rel (0) target = $region17
    $region16: #{tpu_custom_call.1} parent=1 // pred_region
      _
    $region17: #{tpu_custom_call.1} parent=1 // pred_fallthru
      _
    // Predicated region
    $region18: #{tpu_custom_call.1} parent=1 // pred_check
      _
    $region19: #{tpu_custom_call.1} parent=1 // pred_check_branch
      %20 = sbr.rel (0) target = $region21
    $region20: #{tpu_custom_call.1} parent=1 // pred_region
      _
    $region21: #{tpu_custom_call.1} parent=1 // pred_fallthru
      _
    %p21 = scmp.eq.s32.totalorder 0, 0
    // Predicated region
    $region22: #{tpu_custom_call.1} parent=1 // pred_check
      %p22 = pneg %p21
    $region23: #{tpu_custom_call.1} parent=1 // pred_check_branch
      %24 = sbr.rel (%p22) target = $region25
    $region24: #{tpu_custom_call.1} parent=1 // pred_region
      %v25 = vld [vmem:[%s4] sm:$0xff]
      %v26 = vld [vmem:[%s4 + $0x8] sm:$0xff]
      %v27 = vld [vmem:[%s4 + $0x10] sm:$0xff]
      %v28 = vld [vmem:[%s4 + $0x18] sm:$0xff]
      %30 = vset.pattern.permute.xlu0 0
      %31 = vperm.xlu0 %30, %v25
      %v32 = vpop.permute.xlu0 %31
      %35 = vset.pattern.permute.xlu0 0
      %36 = vperm.xlu0 %35, %v26
      %v37 = vpop.permute.xlu0 %36
      %40 = vset.pattern.permute.xlu0 0
      %41 = vperm.xlu0 %40, %v27
      %v42 = vpop.permute.xlu0 %41
      %45 = vset.pattern.permute.xlu0 0
      %46 = vperm.xlu0 %45, %v28
      %v47 = vpop.permute.xlu0 %46
      %49 = vst [vmem:[#allocation2] sm:$0xff] %v32
      %50 = vst [vmem:[#allocation2 + $0x8] sm:$0xff] %v37
      %51 = vst [vmem:[#allocation2 + $0x10] sm:$0xff] %v42
      %52 = vst [vmem:[#allocation2 + $0x18] sm:$0xff] %v47
    $region25: #{tpu_custom_call.1} parent=1 // pred_fallthru
      _
    %v53 = vld [vmem:[%s0] sm:$0xff]
    %v54 = vld [vmem:[%s0 + $0x8] sm:$0xff]
    %v55 = vld [vmem:[%s0 + $0x10] sm:$0xff]
    %v56 = vld [vmem:[%s0 + $0x18] sm:$0xff]
    %v57 = vld [vmem:[%s0 + $0x20] sm:$0xff]
    %v58 = vld [vmem:[%s0 + $0x28] sm:$0xff]
    %v59 = vld [vmem:[%s0 + $0x30] sm:$0xff]
    %v60 = vld [vmem:[%s0 + $0x38] sm:$0xff]
    %v61 = vld [vmem:[%s0 + $0x40] sm:$0xff]
    %v62 = vld [vmem:[%s0 + $0x48] sm:$0xff]
    %v63 = vld [vmem:[%s0 + $0x50] sm:$0xff]
    %v64 = vld [vmem:[%s0 + $0x58] sm:$0xff]
    %v65 = vld [vmem:[%s0 + $0x60] sm:$0xff]
    %v66 = vld [vmem:[%s0 + $0x68] sm:$0xff]
    %v67 = vld [vmem:[%s0 + $0x70] sm:$0xff]
    %v68 = vld [vmem:[%s0 + $0x78] sm:$0xff]
    %v69 = vld [vmem:[%s1] sm:$0x1]
    %71 = vset.pattern.permute.xlu0 0
    %72 = vperm.xlu0 %71, %v53
    %v73 = vpop.permute.xlu0 %72
    %76 = vset.pattern.permute.xlu0 0
    %77 = vperm.xlu0 %76, %v54
    %v78 = vpop.permute.xlu0 %77
    %81 = vset.pattern.permute.xlu0 0
    %82 = vperm.xlu0 %81, %v55
    %v83 = vpop.permute.xlu0 %82
    %86 = vset.pattern.permute.xlu0 0
    %87 = vperm.xlu0 %86, %v56
    %v88 = vpop.permute.xlu0 %87
    %91 = vset.pattern.permute.xlu0 0
    %92 = vperm.xlu0 %91, %v57
    %v93 = vpop.permute.xlu0 %92
    %96 = vset.pattern.permute.xlu0 0
    %97 = vperm.xlu0 %96, %v58
    %v98 = vpop.permute.xlu0 %97
    %101 = vset.pattern.permute.xlu0 0
    %102 = vperm.xlu0 %101, %v59
    %v103 = vpop.permute.xlu0 %102
    %106 = vset.pattern.permute.xlu0 0
    %107 = vperm.xlu0 %106, %v60
    %v108 = vpop.permute.xlu0 %107
    %111 = vset.pattern.permute.xlu0 0
    %112 = vperm.xlu0 %111, %v61
    %v113 = vpop.permute.xlu0 %112
    %116 = vset.pattern.permute.xlu0 0
    %117 = vperm.xlu0 %116, %v62
    %v118 = vpop.permute.xlu0 %117
    %121 = vset.pattern.permute.xlu0 0
    %122 = vperm.xlu0 %121, %v63
    %v123 = vpop.permute.xlu0 %122
    %126 = vset.pattern.permute.xlu0 0
    %127 = vperm.xlu0 %126, %v64
    %v128 = vpop.permute.xlu0 %127
    %131 = vset.pattern.permute.xlu0 0
    %132 = vperm.xlu0 %131, %v65
    %v133 = vpop.permute.xlu0 %132
    %136 = vset.pattern.permute.xlu0 0
    %137 = vperm.xlu0 %136, %v66
    %v138 = vpop.permute.xlu0 %137
    %141 = vset.pattern.permute.xlu0 0
    %142 = vperm.xlu0 %141, %v67
    %v143 = vpop.permute.xlu0 %142
    %146 = vset.pattern.permute.xlu0 0
    %147 = vperm.xlu0 %146, %v68
    %v148 = vpop.permute.xlu0 %147
    %v151 = vlaneseq
    %v152 = vshrl.u32 %v151, 7
    %v153 = vsub.s32 0, %v152
    %v154 = vrot.slane %v69, %v153
    %v156 = vadd.f32 %v73, %v154
    %v157 = vadd.f32 %v78, %v154
    %v158 = vadd.f32 %v83, %v154
    %v159 = vadd.f32 %v88, %v154
    %v160 = vadd.f32 %v93, %v154
    %v161 = vadd.f32 %v98, %v154
    %v162 = vadd.f32 %v103, %v154
    %v163 = vadd.f32 %v108, %v154
    %v164 = vadd.f32 %v113, %v154
    %v165 = vadd.f32 %v118, %v154
    %v166 = vadd.f32 %v123, %v154
    %v167 = vadd.f32 %v128, %v154
    %v168 = vadd.f32 %v133, %v154
    %v169 = vadd.f32 %v138, %v154
    %v170 = vadd.f32 %v143, %v154
    %v171 = vadd.f32 %v148, %v154
    %v172 = vmul.f32 %v156, 0.2
    %v173 = vmul.f32 %v157, 0.2
    %v174 = vmul.f32 %v158, 0.2
    %v175 = vmul.f32 %v159, 0.2
    %v176 = vmul.f32 %v160, 0.2
    %v177 = vmul.f32 %v161, 0.2
    %v178 = vmul.f32 %v162, 0.2
    %v179 = vmul.f32 %v163, 0.2
    %v180 = vmul.f32 %v164, 0.2
    %v181 = vmul.f32 %v165, 0.2
    %v182 = vmul.f32 %v166, 0.2
    %v183 = vmul.f32 %v167, 0.2
    %v184 = vmul.f32 %v168, 0.2
    %v185 = vmul.f32 %v169, 0.2
    %v186 = vmul.f32 %v170, 0.2
    %v187 = vmul.f32 %v171, 0.2
    %v188 = vmax.f32 %v156, %v172
    %v189 = vmax.f32 %v157, %v173
    %v190 = vmax.f32 %v158, %v174
    %v191 = vmax.f32 %v159, %v175
    %v192 = vmax.f32 %v160, %v176
    %v193 = vmax.f32 %v161, %v177
    %v194 = vmax.f32 %v162, %v178
    %v195 = vmax.f32 %v163, %v179
    %v196 = vmax.f32 %v164, %v180
    %v197 = vmax.f32 %v165, %v181
    %v198 = vmax.f32 %v166, %v182
    %v199 = vmax.f32 %v167, %v183
    %v200 = vmax.f32 %v168, %v184
    %v201 = vmax.f32 %v169, %v185
    %v202 = vmax.f32 %v170, %v186
    %v203 = vmax.f32 %v171, %v187
    %v204 = vld [vmem:[%s3] sm:$0xf]
    %v205 = vld [vmem:[%s3 + $0x4] sm:$0xf]
    %v206 = vld [vmem:[%s3 + $0x8] sm:$0xf]
    %v207 = vld [vmem:[%s3 + $0xc] sm:$0xf]
    %v208 = vld [vmem:[%s3 + $0x10] sm:$0xf]
    %v209 = vld [vmem:[%s3 + $0x14] sm:$0xf]
    %v210 = vld [vmem:[%s3 + $0x18] sm:$0xf]
    %v211 = vld [vmem:[%s3 + $0x1c] sm:$0xf]
    %v212 = vld [vmem:[%s3 + $0x20] sm:$0xf]
    %v213 = vld [vmem:[%s3 + $0x24] sm:$0xf]
    %v214 = vld [vmem:[%s3 + $0x28] sm:$0xf]
    %v215 = vld [vmem:[%s3 + $0x2c] sm:$0xf]
    %v216 = vld [vmem:[%s3 + $0x30] sm:$0xf]
    %v217 = vld [vmem:[%s3 + $0x34] sm:$0xf]
    %v218 = vld [vmem:[%s3 + $0x38] sm:$0xf]
    %v219 = vld [vmem:[%s3 + $0x3c] sm:$0xf]
    %v220 = vunpack.c.l.bf16 %v204
    %v221 = vunpack.c.l.bf16 %v205
    %v222 = vunpack.c.l.bf16 %v206
    %v223 = vunpack.c.l.bf16 %v207
    %v224 = vunpack.c.l.bf16 %v208
    %v225 = vunpack.c.l.bf16 %v209
    %v226 = vunpack.c.l.bf16 %v210
    %v227 = vunpack.c.l.bf16 %v211
    %v228 = vunpack.c.l.bf16 %v212
    %v229 = vunpack.c.l.bf16 %v213
    %v230 = vunpack.c.l.bf16 %v214
    %v231 = vunpack.c.l.bf16 %v215
    %v232 = vunpack.c.l.bf16 %v216
    %v233 = vunpack.c.l.bf16 %v217
    %v234 = vunpack.c.l.bf16 %v218
    %v235 = vunpack.c.l.bf16 %v219
    %v236 = vadd.f32 %v188, %v220
    %v237 = vadd.f32 %v189, %v221
    %v238 = vadd.f32 %v190, %v222
    %v239 = vadd.f32 %v191, %v223
    %v240 = vadd.f32 %v192, %v224
    %v241 = vadd.f32 %v193, %v225
    %v242 = vadd.f32 %v194, %v226
    %v243 = vadd.f32 %v195, %v227
    %v244 = vadd.f32 %v196, %v228
    %v245 = vadd.f32 %v197, %v229
    %v246 = vadd.f32 %v198, %v230
    %v247 = vadd.f32 %v199, %v231
    %v248 = vadd.f32 %v200, %v232
    %v249 = vadd.f32 %v201, %v233
    %v250 = vadd.f32 %v202, %v234
    %v251 = vadd.f32 %v203, %v235
    %252 = vmax.xlane.f32.xlu0 %v236
    %v253 = vpop.xlane.xlu0 %252
    %254 = vmax.xlane.f32.xlu0 %v237
    %v255 = vpop.xlane.xlu0 %254
    %256 = vmax.xlane.f32.xlu0 %v238
    %v257 = vpop.xlane.xlu0 %256
    %258 = vmax.xlane.f32.xlu0 %v239
    %v259 = vpop.xlane.xlu0 %258
    %260 = vmax.xlane.f32.xlu0 %v240
    %v261 = vpop.xlane.xlu0 %260
    %262 = vmax.xlane.f32.xlu0 %v241
    %v263 = vpop.xlane.xlu0 %262
    %264 = vmax.xlane.f32.xlu0 %v242
    %v265 = vpop.xlane.xlu0 %264
    %266 = vmax.xlane.f32.xlu0 %v243
    %v267 = vpop.xlane.xlu0 %266
    %268 = vmax.xlane.f32.xlu0 %v244
    %v269 = vpop.xlane.xlu0 %268
    %270 = vmax.xlane.f32.xlu0 %v245
    %v271 = vpop.xlane.xlu0 %270
    %272 = vmax.xlane.f32.xlu0 %v246
    %v273 = vpop.xlane.xlu0 %272
    %274 = vmax.xlane.f32.xlu0 %v247
    %v275 = vpop.xlane.xlu0 %274
    %276 = vmax.xlane.f32.xlu0 %v248
    %v277 = vpop.xlane.xlu0 %276
    %278 = vmax.xlane.f32.xlu0 %v249
    %v279 = vpop.xlane.xlu0 %278
    %280 = vmax.xlane.f32.xlu0 %v250
    %v281 = vpop.xlane.xlu0 %280
    %282 = vmax.xlane.f32.xlu0 %v251
    %v283 = vpop.xlane.xlu0 %282
    %v284 = vsub.f32 %v236, %v253
    %v285 = vsub.f32 %v237, %v255
    %v286 = vsub.f32 %v238, %v257
    %v287 = vsub.f32 %v239, %v259
    %v288 = vsub.f32 %v240, %v261
    %v289 = vsub.f32 %v241, %v263
    %v290 = vsub.f32 %v242, %v265
    %v291 = vsub.f32 %v243, %v267
    %v292 = vsub.f32 %v244, %v269
    %v293 = vsub.f32 %v245, %v271
    %v294 = vsub.f32 %v246, %v273
    %v295 = vsub.f32 %v247, %v275
    %v296 = vsub.f32 %v248, %v277
    %v297 = vsub.f32 %v249, %v279
    %v298 = vsub.f32 %v250, %v281
    %v299 = vsub.f32 %v251, %v283
    %v300 = vmul.f32 %v284, 1.442695
    %v301 = vpow.pop %v300
    %v302 = vmul.f32 %v285, 1.442695
    %v303 = vpow.pop %v302
    %v304 = vmul.f32 %v286, 1.442695
    %v305 = vpow.pop %v304
    %v306 = vmul.f32 %v287, 1.442695
    %v307 = vpow.pop %v306
    %v308 = vmul.f32 %v288, 1.442695
    %v309 = vpow.pop %v308
    %v310 = vmul.f32 %v289, 1.442695
    %v311 = vpow.pop %v310
    %v312 = vmul.f32 %v290, 1.442695
    %v313 = vpow.pop %v312
    %v314 = vmul.f32 %v291, 1.442695
    %v315 = vpow.pop %v314
    %v316 = vmul.f32 %v292, 1.442695
    %v317 = vpow.pop %v316
    %v318 = vmul.f32 %v293, 1.442695
    %v319 = vpow.pop %v318
    %v320 = vmul.f32 %v294, 1.442695
    %v321 = vpow.pop %v320
    %v322 = vmul.f32 %v295, 1.442695
    %v323 = vpow.pop %v322
    %v324 = vmul.f32 %v296, 1.442695
    %v325 = vpow.pop %v324
    %v326 = vmul.f32 %v297, 1.442695
    %v327 = vpow.pop %v326
    %v328 = vmul.f32 %v298, 1.442695
    %v329 = vpow.pop %v328
    %v330 = vmul.f32 %v299, 1.442695
    %v331 = vpow.pop %v330
    %332 = vadd.xlane.f32.xlu0 %v301
    %v333 = vpop.xlane.xlu0 %332
    %334 = vadd.xlane.f32.xlu0 %v303
    %v335 = vpop.xlane.xlu0 %334
    %336 = vadd.xlane.f32.xlu0 %v305
    %v337 = vpop.xlane.xlu0 %336
    %338 = vadd.xlane.f32.xlu0 %v307
    %v339 = vpop.xlane.xlu0 %338
    %340 = vadd.xlane.f32.xlu0 %v309
    %v341 = vpop.xlane.xlu0 %340
    %342 = vadd.xlane.f32.xlu0 %v311
    %v343 = vpop.xlane.xlu0 %342
    %344 = vadd.xlane.f32.xlu0 %v313
    %v345 = vpop.xlane.xlu0 %344
    %346 = vadd.xlane.f32.xlu0 %v315
    %v347 = vpop.xlane.xlu0 %346
    %348 = vadd.xlane.f32.xlu0 %v317
    %v349 = vpop.xlane.xlu0 %348
    %350 = vadd.xlane.f32.xlu0 %v319
    %v351 = vpop.xlane.xlu0 %350
    %352 = vadd.xlane.f32.xlu0 %v321
    %v353 = vpop.xlane.xlu0 %352
    %354 = vadd.xlane.f32.xlu0 %v323
    %v355 = vpop.xlane.xlu0 %354
    %356 = vadd.xlane.f32.xlu0 %v325
    %v357 = vpop.xlane.xlu0 %356
    %358 = vadd.xlane.f32.xlu0 %v327
    %v359 = vpop.xlane.xlu0 %358
    %360 = vadd.xlane.f32.xlu0 %v329
    %v361 = vpop.xlane.xlu0 %360
    %362 = vadd.xlane.f32.xlu0 %v331
    %v363 = vpop.xlane.xlu0 %362
    %v364 = vadd.f32 %v333, 1e-16
    %v365 = vadd.f32 %v335, 1e-16
    %v366 = vadd.f32 %v337, 1e-16
    %v367 = vadd.f32 %v339, 1e-16
    %v368 = vadd.f32 %v341, 1e-16
    %v369 = vadd.f32 %v343, 1e-16
    %v370 = vadd.f32 %v345, 1e-16
    %v371 = vadd.f32 %v347, 1e-16
    %v372 = vadd.f32 %v349, 1e-16
    %v373 = vadd.f32 %v351, 1e-16
    %v374 = vadd.f32 %v353, 1e-16
    %v375 = vadd.f32 %v355, 1e-16
    %v376 = vadd.f32 %v357, 1e-16
    %v377 = vadd.f32 %v359, 1e-16
    %v378 = vadd.f32 %v361, 1e-16
    %v379 = vadd.f32 %v363, 1e-16
    %v380 = vrcp.pop %v364
    %v381 = vmul.f32 %v301, %v380
    %v382 = vrcp.pop %v365
    %v383 = vmul.f32 %v303, %v382
    %v384 = vrcp.pop %v366
    %v385 = vmul.f32 %v305, %v384
    %v386 = vrcp.pop %v367
    %v387 = vmul.f32 %v307, %v386
    %v388 = vrcp.pop %v368
    %v389 = vmul.f32 %v309, %v388
    %v390 = vrcp.pop %v369
    %v391 = vmul.f32 %v311, %v390
    %v392 = vrcp.pop %v370
    %v393 = vmul.f32 %v313, %v392
    %v394 = vrcp.pop %v371
    %v395 = vmul.f32 %v315, %v394
    %v396 = vrcp.pop %v372
    %v397 = vmul.f32 %v317, %v396
    %v398 = vrcp.pop %v373
    %v399 = vmul.f32 %v319, %v398
    %v400 = vrcp.pop %v374
    %v401 = vmul.f32 %v321, %v400
    %v402 = vrcp.pop %v375
    %v403 = vmul.f32 %v323, %v402
    %v404 = vrcp.pop %v376
    %v405 = vmul.f32 %v325, %v404
    %v406 = vrcp.pop %v377
    %v407 = vmul.f32 %v327, %v406
    %v408 = vrcp.pop %v378
    %v409 = vmul.f32 %v329, %v408
    %v410 = vrcp.pop %v379
    %v411 = vmul.f32 %v331, %v410
    %v412 = vld [vmem:[#allocation2] sm:$0xff]
    %v413 = vld [vmem:[#allocation2 + $0x8] sm:$0xff]
    %v414 = vld [vmem:[%s2] sm:$0xff]
    %v415 = vld [vmem:[%s2 + $0x8] sm:$0xff]
    %416 = vmatprep.subr.mxu0 0.0
    %417 = vmatpush1.msra.mxu0 %v381
    %418 = vmatprep.subr.mxu0 0.0
    %419 = vmatpush1.msra.mxu0 %v383
    %420 = vmatprep.subr.mxu0 0.0
    %421 = vmatpush1.msra.mxu0 %v385
    %422 = vmatprep.subr.mxu0 0.0
    %423 = vmatpush1.msra.mxu0 %v387
    %424 = vmatprep.subr.mxu0 0.0
    %425 = vmatpush1.msra.mxu0 %v389
    %426 = vmatprep.subr.mxu0 0.0
    %427 = vmatpush1.msra.mxu0 %v391
    %428 = vmatprep.subr.mxu0 0.0
    %429 = vmatpush1.msra.mxu0 %v393
    %430 = vmatprep.subr.mxu0 0.0
    %431 = vmatpush1.msra.mxu0 %v395
    %432 = vmatprep.subr.mxu0 0.0
    %433 = vmatpush1.msra.mxu0 %v397
    %434 = vmatprep.subr.mxu0 0.0
    %435 = vmatpush1.msra.mxu0 %v399
    %436 = vmatprep.subr.mxu0 0.0
    %437 = vmatpush1.msra.mxu0 %v401
    %438 = vmatprep.subr.mxu0 0.0
    %439 = vmatpush1.msra.mxu0 %v403
    %440 = vmatprep.subr.mxu0 0.0
    %441 = vmatpush1.msra.mxu0 %v405
    %442 = vmatprep.subr.mxu0 0.0
    %443 = vmatpush1.msra.mxu0 %v407
    %444 = vmatprep.subr.mxu0 0.0
    %445 = vmatpush1.msra.mxu0 %v409
    %446 = vmatprep.subr.mxu0 0.0
    %447 = vmatpush1.msra.mxu0 %v411
    %448 = vmatprep.subr.mxu0 0.0
    %449 = vmatpush1.msra.mxu0 0.0
    %450 = vmatprep.subr.mxu0 0.0
    %451 = vmatpush1.msra.mxu0 0.0
    %452 = vmatprep.subr.mxu0 0.0
    %453 = vmatpush1.msra.mxu0 0.0
    %454 = vmatprep.subr.mxu0 0.0
    %455 = vmatpush1.msra.mxu0 0.0
    %456 = vmatprep.subr.mxu0 0.0
    %457 = vmatpush1.msra.mxu0 0.0
    %458 = vmatprep.subr.mxu0 0.0
    %459 = vmatpush1.msra.mxu0 0.0
    %460 = vmatprep.subr.mxu0 0.0
    %461 = vmatpush1.msra.mxu0 0.0
    %462 = vmatprep.subr.mxu0 0.0
    %463 = vmatpush1.msra.mxu0 0.0
    %464 = vmatprep.subr.mxu0 0.0
    %465 = vmatpush1.msra.mxu0 0.0
    %466 = vmatprep.subr.mxu0 0.0
    %467 = vmatpush1.msra.mxu0 0.0
    %468 = vmatprep.subr.mxu0 0.0
    %469 = vmatpush1.msra.mxu0 0.0
    %470 = vmatprep.subr.mxu0 0.0
    %471 = vmatpush1.msra.mxu0 0.0
    %472 = vmatprep.subr.mxu0 0.0
    %473 = vmatpush1.msra.mxu0 0.0
    %474 = vmatprep.subr.mxu0 0.0
    %475 = vmatpush1.msra.mxu0 0.0
    %476 = vmatprep.subr.mxu0 0.0
    %477 = vmatpush1.msra.mxu0 0.0
    %478 = vmatprep.subr.mxu0 0.0
    %479 = vmatpush1.msra.mxu0 0.0
    %480 = vmatprep.mubr.f32.mxu0 0.0
    %481 = vmatmul.mubr.f32.gmra.mrb[0].mxu0 %v414
    %v482 = vpop.f32.mrb[0].mxu0
    %v483 = vadd.f32 0.0, %v482
    %v484 = vpop.f32.mrb[0].mxu0
    %485 = vmatprep.mubr.f32.mxu0 0.0
    %486 = vmatmul.mubr.f32.gmra.mrb[0].mxu0 %v415
    %v487 = vpop.f32.mrb[0].mxu0
    %v488 = vadd.f32 0.0, %v487
    %v489 = vpop.f32.mrb[0].mxu0
    %490 = vdwg.mxu0
    %v491 = vadd.f32 %v412, %v483
    %v492 = vadd.f32 %v413, %v488
    %493 = vst [vmem:[#allocation2] sm:$0xff] %v491
    %494 = vst [vmem:[#allocation2 + $0x8] sm:$0xff] %v492
    %s495 = scalar_lea.vmem %s0, 128
    %v496 = vld [vmem:[%s495] sm:$0xff]
    %v497 = vld [vmem:[%s495 + $0x8] sm:$0xff]
    %v498 = vld [vmem:[%s495 + $0x10] sm:$0xff]
    %v499 = vld [vmem:[%s495 + $0x18] sm:$0xff]
    %v500 = vld [vmem:[%s495 + $0x20] sm:$0xff]
    %v501 = vld [vmem:[%s495 + $0x28] sm:$0xff]
    %v502 = vld [vmem:[%s495 + $0x30] sm:$0xff]
    %v503 = vld [vmem:[%s495 + $0x38] sm:$0xff]
    %v504 = vld [vmem:[%s495 + $0x40] sm:$0xff]
    %v505 = vld [vmem:[%s495 + $0x48] sm:$0xff]
    %v506 = vld [vmem:[%s495 + $0x50] sm:$0xff]
    %v507 = vld [vmem:[%s495 + $0x58] sm:$0xff]
    %v508 = vld [vmem:[%s495 + $0x60] sm:$0xff]
    %v509 = vld [vmem:[%s495 + $0x68] sm:$0xff]
    %v510 = vld [vmem:[%s495 + $0x70] sm:$0xff]
    %v511 = vld [vmem:[%s495 + $0x78] sm:$0xff]
    %s512 = scalar_lea.vmem %s1, 1
    %v513 = vld [vmem:[%s512] sm:$0x1]
    %515 = vset.pattern.permute.xlu0 0
    %516 = vperm.xlu0 %515, %v496
    %v517 = vpop.permute.xlu0 %516
    %520 = vset.pattern.permute.xlu0 0
    %521 = vperm.xlu0 %520, %v497
    %v522 = vpop.permute.xlu0 %521
    %525 = vset.pattern.permute.xlu0 0
    %526 = vperm.xlu0 %525, %v498
    %v527 = vpop.permute.xlu0 %526
    %530 = vset.pattern.permute.xlu0 0
    %531 = vperm.xlu0 %530, %v499
    %v532 = vpop.permute.xlu0 %531
    %535 = vset.pattern.permute.xlu0 0
    %536 = vperm.xlu0 %535, %v500
    %v537 = vpop.permute.xlu0 %536
    %540 = vset.pattern.permute.xlu0 0
    %541 = vperm.xlu0 %540, %v501
    %v542 = vpop.permute.xlu0 %541
    %545 = vset.pattern.permute.xlu0 0
    %546 = vperm.xlu0 %545, %v502
    %v547 = vpop.permute.xlu0 %546
    %550 = vset.pattern.permute.xlu0 0
    %551 = vperm.xlu0 %550, %v503
    %v552 = vpop.permute.xlu0 %551
    %555 = vset.pattern.permute.xlu0 0
    %556 = vperm.xlu0 %555, %v504
    %v557 = vpop.permute.xlu0 %556
    %560 = vset.pattern.permute.xlu0 0
    %561 = vperm.xlu0 %560, %v505
    %v562 = vpop.permute.xlu0 %561
    %565 = vset.pattern.permute.xlu0 0
    %566 = vperm.xlu0 %565, %v506
    %v567 = vpop.permute.xlu0 %566
    %570 = vset.pattern.permute.xlu0 0
    %571 = vperm.xlu0 %570, %v507
    %v572 = vpop.permute.xlu0 %571
    %575 = vset.pattern.permute.xlu0 0
    %576 = vperm.xlu0 %575, %v508
    %v577 = vpop.permute.xlu0 %576
    %580 = vset.pattern.permute.xlu0 0
    %581 = vperm.xlu0 %580, %v509
    %v582 = vpop.permute.xlu0 %581
    %585 = vset.pattern.permute.xlu0 0
    %586 = vperm.xlu0 %585, %v510
    %v587 = vpop.permute.xlu0 %586
    %590 = vset.pattern.permute.xlu0 0
    %591 = vperm.xlu0 %590, %v511
    %v592 = vpop.permute.xlu0 %591
    %v595 = vlaneseq
    %v596 = vshrl.u32 %v595, 7
    %v597 = vsub.s32 0, %v596
    %v598 = vrot.slane %v513, %v597
    %v600 = vadd.f32 %v517, %v598
    %v601 = vadd.f32 %v522, %v598
    %v602 = vadd.f32 %v527, %v598
    %v603 = vadd.f32 %v532, %v598
    %v604 = vadd.f32 %v537, %v598
    %v605 = vadd.f32 %v542, %v598
    %v606 = vadd.f32 %v547, %v598
    %v607 = vadd.f32 %v552, %v598
    %v608 = vadd.f32 %v557, %v598
    %v609 = vadd.f32 %v562, %v598
    %v610 = vadd.f32 %v567, %v598
    %v611 = vadd.f32 %v572, %v598
    %v612 = vadd.f32 %v577, %v598
    %v613 = vadd.f32 %v582, %v598
    %v614 = vadd.f32 %v587, %v598
    %v615 = vadd.f32 %v592, %v598
    %v616 = vmul.f32 %v600, 0.2
    %v617 = vmul.f32 %v601, 0.2
    %v618 = vmul.f32 %v602, 0.2
    %v619 = vmul.f32 %v603, 0.2
    %v620 = vmul.f32 %v604, 0.2
    %v621 = vmul.f32 %v605, 0.2
    %v622 = vmul.f32 %v606, 0.2
    %v623 = vmul.f32 %v607, 0.2
    %v624 = vmul.f32 %v608, 0.2
    %v625 = vmul.f32 %v609, 0.2
    %v626 = vmul.f32 %v610, 0.2
    %v627 = vmul.f32 %v611, 0.2
    %v628 = vmul.f32 %v612, 0.2
    %v629 = vmul.f32 %v613, 0.2
    %v630 = vmul.f32 %v614, 0.2
    %v631 = vmul.f32 %v615, 0.2
    %v632 = vmax.f32 %v600, %v616
    %v633 = vmax.f32 %v601, %v617
    %v634 = vmax.f32 %v602, %v618
    %v635 = vmax.f32 %v603, %v619
    %v636 = vmax.f32 %v604, %v620
    %v637 = vmax.f32 %v605, %v621
    %v638 = vmax.f32 %v606, %v622
    %v639 = vmax.f32 %v607, %v623
    %v640 = vmax.f32 %v608, %v624
    %v641 = vmax.f32 %v609, %v625
    %v642 = vmax.f32 %v610, %v626
    %v643 = vmax.f32 %v611, %v627
    %v644 = vmax.f32 %v612, %v628
    %v645 = vmax.f32 %v613, %v629
    %v646 = vmax.f32 %v614, %v630
    %v647 = vmax.f32 %v615, %v631
    %v648 = vld [vmem:[%s3] sm:$0xf]
    %v649 = vld [vmem:[%s3 + $0x4] sm:$0xf]
    %v650 = vld [vmem:[%s3 + $0x8] sm:$0xf]
    %v651 = vld [vmem:[%s3 + $0xc] sm:$0xf]
    %v652 = vld [vmem:[%s3 + $0x10] sm:$0xf]
    %v653 = vld [vmem:[%s3 + $0x14] sm:$0xf]
    %v654 = vld [vmem:[%s3 + $0x18] sm:$0xf]
    %v655 = vld [vmem:[%s3 + $0x1c] sm:$0xf]
    %v656 = vld [vmem:[%s3 + $0x20] sm:$0xf]
    %v657 = vld [vmem:[%s3 + $0x24] sm:$0xf]
    %v658 = vld [vmem:[%s3 + $0x28] sm:$0xf]
    %v659 = vld [vmem:[%s3 + $0x2c] sm:$0xf]
    %v660 = vld [vmem:[%s3 + $0x30] sm:$0xf]
    %v661 = vld [vmem:[%s3 + $0x34] sm:$0xf]
    %v662 = vld [vmem:[%s3 + $0x38] sm:$0xf]
    %v663 = vld [vmem:[%s3 + $0x3c] sm:$0xf]
    %v664 = vunpack.c.l.bf16 %v648
    %v665 = vunpack.c.l.bf16 %v649
    %v666 = vunpack.c.l.bf16 %v650
    %v667 = vunpack.c.l.bf16 %v651
    %v668 = vunpack.c.l.bf16 %v652
    %v669 = vunpack.c.l.bf16 %v653
    %v670 = vunpack.c.l.bf16 %v654
    %v671 = vunpack.c.l.bf16 %v655
    %v672 = vunpack.c.l.bf16 %v656
    %v673 = vunpack.c.l.bf16 %v657
    %v674 = vunpack.c.l.bf16 %v658
    %v675 = vunpack.c.l.bf16 %v659
    %v676 = vunpack.c.l.bf16 %v660
    %v677 = vunpack.c.l.bf16 %v661
    %v678 = vunpack.c.l.bf16 %v662
    %v679 = vunpack.c.l.bf16 %v663
    %v680 = vadd.f32 %v632, %v664
    %v681 = vadd.f32 %v633, %v665
    %v682 = vadd.f32 %v634, %v666
    %v683 = vadd.f32 %v635, %v667
    %v684 = vadd.f32 %v636, %v668
    %v685 = vadd.f32 %v637, %v669
    %v686 = vadd.f32 %v638, %v670
    %v687 = vadd.f32 %v639, %v671
    %v688 = vadd.f32 %v640, %v672
    %v689 = vadd.f32 %v641, %v673
    %v690 = vadd.f32 %v642, %v674
    %v691 = vadd.f32 %v643, %v675
    %v692 = vadd.f32 %v644, %v676
    %v693 = vadd.f32 %v645, %v677
    %v694 = vadd.f32 %v646, %v678
    %v695 = vadd.f32 %v647, %v679
    %696 = vmax.xlane.f32.xlu0 %v680
    %v697 = vpop.xlane.xlu0 %696
    %698 = vmax.xlane.f32.xlu0 %v681
    %v699 = vpop.xlane.xlu0 %698
    %700 = vmax.xlane.f32.xlu0 %v682
    %v701 = vpop.xlane.xlu0 %700
    %702 = vmax.xlane.f32.xlu0 %v683
    %v703 = vpop.xlane.xlu0 %702
    %704 = vmax.xlane.f32.xlu0 %v684
    %v705 = vpop.xlane.xlu0 %704
    %706 = vmax.xlane.f32.xlu0 %v685
    %v707 = vpop.xlane.xlu0 %706
    %708 = vmax.xlane.f32.xlu0 %v686
    %v709 = vpop.xlane.xlu0 %708
    %710 = vmax.xlane.f32.xlu0 %v687
    %v711 = vpop.xlane.xlu0 %710
    %712 = vmax.xlane.f32.xlu0 %v688
    %v713 = vpop.xlane.xlu0 %712
    %714 = vmax.xlane.f32.xlu0 %v689
    %v715 = vpop.xlane.xlu0 %714
    %716 = vmax.xlane.f32.xlu0 %v690
    %v717 = vpop.xlane.xlu0 %716
    %718 = vmax.xlane.f32.xlu0 %v691
    %v719 = vpop.xlane.xlu0 %718
    %720 = vmax.xlane.f32.xlu0 %v692
    %v721 = vpop.xlane.xlu0 %720
    %722 = vmax.xlane.f32.xlu0 %v693
    %v723 = vpop.xlane.xlu0 %722
    %724 = vmax.xlane.f32.xlu0 %v694
    %v725 = vpop.xlane.xlu0 %724
    %726 = vmax.xlane.f32.xlu0 %v695
    %v727 = vpop.xlane.xlu0 %726
    %v728 = vsub.f32 %v680, %v697
    %v729 = vsub.f32 %v681, %v699
    %v730 = vsub.f32 %v682, %v701
    %v731 = vsub.f32 %v683, %v703
    %v732 = vsub.f32 %v684, %v705
    %v733 = vsub.f32 %v685, %v707
    %v734 = vsub.f32 %v686, %v709
    %v735 = vsub.f32 %v687, %v711
    %v736 = vsub.f32 %v688, %v713
    %v737 = vsub.f32 %v689, %v715
    %v738 = vsub.f32 %v690, %v717
    %v739 = vsub.f32 %v691, %v719
    %v740 = vsub.f32 %v692, %v721
    %v741 = vsub.f32 %v693, %v723
    %v742 = vsub.f32 %v694, %v725
    %v743 = vsub.f32 %v695, %v727
    %v744 = vmul.f32 %v728, 1.442695
    %v745 = vpow.pop %v744
    %v746 = vmul.f32 %v729, 1.442695
    %v747 = vpow.pop %v746
    %v748 = vmul.f32 %v730, 1.442695
    %v749 = vpow.pop %v748
    %v750 = vmul.f32 %v731, 1.442695
    %v751 = vpow.pop %v750
    %v752 = vmul.f32 %v732, 1.442695
    %v753 = vpow.pop %v752
    %v754 = vmul.f32 %v733, 1.442695
    %v755 = vpow.pop %v754
    %v756 = vmul.f32 %v734, 1.442695
    %v757 = vpow.pop %v756
    %v758 = vmul.f32 %v735, 1.442695
    %v759 = vpow.pop %v758
    %v760 = vmul.f32 %v736, 1.442695
    %v761 = vpow.pop %v760
    %v762 = vmul.f32 %v737, 1.442695
    %v763 = vpow.pop %v762
    %v764 = vmul.f32 %v738, 1.442695
    %v765 = vpow.pop %v764
    %v766 = vmul.f32 %v739, 1.442695
    %v767 = vpow.pop %v766
    %v768 = vmul.f32 %v740, 1.442695
    %v769 = vpow.pop %v768
    %v770 = vmul.f32 %v741, 1.442695
    %v771 = vpow.pop %v770
    %v772 = vmul.f32 %v742, 1.442695
    %v773 = vpow.pop %v772
    %v774 = vmul.f32 %v743, 1.442695
    %v775 = vpow.pop %v774
    %776 = vadd.xlane.f32.xlu0 %v745
    %v777 = vpop.xlane.xlu0 %776
    %778 = vadd.xlane.f32.xlu0 %v747
    %v779 = vpop.xlane.xlu0 %778
    %780 = vadd.xlane.f32.xlu0 %v749
    %v781 = vpop.xlane.xlu0 %780
    %782 = vadd.xlane.f32.xlu0 %v751
    %v783 = vpop.xlane.xlu0 %782
    %784 = vadd.xlane.f32.xlu0 %v753
    %v785 = vpop.xlane.xlu0 %784
    %786 = vadd.xlane.f32.xlu0 %v755
    %v787 = vpop.xlane.xlu0 %786
    %788 = vadd.xlane.f32.xlu0 %v757
    %v789 = vpop.xlane.xlu0 %788
    %790 = vadd.xlane.f32.xlu0 %v759
    %v791 = vpop.xlane.xlu0 %790
    %792 = vadd.xlane.f32.xlu0 %v761
    %v793 = vpop.xlane.xlu0 %792
    %794 = vadd.xlane.f32.xlu0 %v763
    %v795 = vpop.xlane.xlu0 %794
    %796 = vadd.xlane.f32.xlu0 %v765
    %v797 = vpop.xlane.xlu0 %796
    %798 = vadd.xlane.f32.xlu0 %v767
    %v799 = vpop.xlane.xlu0 %798
    %800 = vadd.xlane.f32.xlu0 %v769
    %v801 = vpop.xlane.xlu0 %800
    %802 = vadd.xlane.f32.xlu0 %v771
    %v803 = vpop.xlane.xlu0 %802
    %804 = vadd.xlane.f32.xlu0 %v773
    %v805 = vpop.xlane.xlu0 %804
    %806 = vadd.xlane.f32.xlu0 %v775
    %v807 = vpop.xlane.xlu0 %806
    %v808 = vadd.f32 %v777, 1e-16
    %v809 = vadd.f32 %v779, 1e-16
    %v810 = vadd.f32 %v781, 1e-16
    %v811 = vadd.f32 %v783, 1e-16
    %v812 = vadd.f32 %v785, 1e-16
    %v813 = vadd.f32 %v787, 1e-16
    %v814 = vadd.f32 %v789, 1e-16
    %v815 = vadd.f32 %v791, 1e-16
    %v816 = vadd.f32 %v793, 1e-16
    %v817 = vadd.f32 %v795, 1e-16
    %v818 = vadd.f32 %v797, 1e-16
    %v819 = vadd.f32 %v799, 1e-16
    %v820 = vadd.f32 %v801, 1e-16
    %v821 = vadd.f32 %v803, 1e-16
    %v822 = vadd.f32 %v805, 1e-16
    %v823 = vadd.f32 %v807, 1e-16
    %v824 = vrcp.pop %v808
    %v825 = vmul.f32 %v745, %v824
    %v826 = vrcp.pop %v809
    %v827 = vmul.f32 %v747, %v826
    %v828 = vrcp.pop %v810
    %v829 = vmul.f32 %v749, %v828
    %v830 = vrcp.pop %v811
    %v831 = vmul.f32 %v751, %v830
    %v832 = vrcp.pop %v812
    %v833 = vmul.f32 %v753, %v832
    %v834 = vrcp.pop %v813
    %v835 = vmul.f32 %v755, %v834
    %v836 = vrcp.pop %v814
    %v837 = vmul.f32 %v757, %v836
    %v838 = vrcp.pop %v815
    %v839 = vmul.f32 %v759, %v838
    %v840 = vrcp.pop %v816
    %v841 = vmul.f32 %v761, %v840
    %v842 = vrcp.pop %v817
    %v843 = vmul.f32 %v763, %v842
    %v844 = vrcp.pop %v818
    %v845 = vmul.f32 %v765, %v844
    %v846 = vrcp.pop %v819
    %v847 = vmul.f32 %v767, %v846
    %v848 = vrcp.pop %v820
    %v849 = vmul.f32 %v769, %v848
    %v850 = vrcp.pop %v821
    %v851 = vmul.f32 %v771, %v850
    %v852 = vrcp.pop %v822
    %v853 = vmul.f32 %v773, %v852
    %v854 = vrcp.pop %v823
    %v855 = vmul.f32 %v775, %v854
    %s856 = scalar_lea.vmem [#allocation2], 16
    %v857 = vld [vmem:[%s856] sm:$0xff]
    %v858 = vld [vmem:[%s856 + $0x8] sm:$0xff]
    %s859 = scalar_lea.vmem %s2, 16
    %v860 = vld [vmem:[%s859] sm:$0xff]
    %v861 = vld [vmem:[%s859 + $0x8] sm:$0xff]
    %862 = vmatprep.subr.mxu0 0.0
    %863 = vmatpush1.msra.mxu0 %v825
    %864 = vmatprep.subr.mxu0 0.0
    %865 = vmatpush1.msra.mxu0 %v827
    %866 = vmatprep.subr.mxu0 0.0
    %867 = vmatpush1.msra.mxu0 %v829
    %868 = vmatprep.subr.mxu0 0.0
    %869 = vmatpush1.msra.mxu0 %v831
    %870 = vmatprep.subr.mxu0 0.0
    %871 = vmatpush1.msra.mxu0 %v833
    %872 = vmatprep.subr.mxu0 0.0
    %873 = vmatpush1.msra.mxu0 %v835
    %874 = vmatprep.subr.mxu0 0.0
    %875 = vmatpush1.msra.mxu0 %v837
    %876 = vmatprep.subr.mxu0 0.0
    %877 = vmatpush1.msra.mxu0 %v839
    %878 = vmatprep.subr.mxu0 0.0
    %879 = vmatpush1.msra.mxu0 %v841
    %880 = vmatprep.subr.mxu0 0.0
    %881 = vmatpush1.msra.mxu0 %v843
    %882 = vmatprep.subr.mxu0 0.0
    %883 = vmatpush1.msra.mxu0 %v845
    %884 = vmatprep.subr.mxu0 0.0
    %885 = vmatpush1.msra.mxu0 %v847
    %886 = vmatprep.subr.mxu0 0.0
    %887 = vmatpush1.msra.mxu0 %v849
    %888 = vmatprep.subr.mxu0 0.0
    %889 = vmatpush1.msra.mxu0 %v851
    %890 = vmatprep.subr.mxu0 0.0
    %891 = vmatpush1.msra.mxu0 %v853
    %892 = vmatprep.subr.mxu0 0.0
    %893 = vmatpush1.msra.mxu0 %v855
    %894 = vmatprep.subr.mxu0 0.0
    %895 = vmatpush1.msra.mxu0 0.0
    %896 = vmatprep.subr.mxu0 0.0
    %897 = vmatpush1.msra.mxu0 0.0
    %898 = vmatprep.subr.mxu0 0.0
    %899 = vmatpush1.msra.mxu0 0.0
    %900 = vmatprep.subr.mxu0 0.0
    %901 = vmatpush1.msra.mxu0 0.0
    %902 = vmatprep.subr.mxu0 0.0
    %903 = vmatpush1.msra.mxu0 0.0
    %904 = vmatprep.subr.mxu0 0.0
    %905 = vmatpush1.msra.mxu0 0.0
    %906 = vmatprep.subr.mxu0 0.0
    %907 = vmatpush1.msra.mxu0 0.0
    %908 = vmatprep.subr.mxu0 0.0
    %909 = vmatpush1.msra.mxu0 0.0
    %910 = vmatprep.subr.mxu0 0.0
    %911 = vmatpush1.msra.mxu0 0.0
    %912 = vmatprep.subr.mxu0 0.0
    %913 = vmatpush1.msra.mxu0 0.0
    %914 = vmatprep.subr.mxu0 0.0
    %915 = vmatpush1.msra.mxu0 0.0
    %916 = vmatprep.subr.mxu0 0.0
    %917 = vmatpush1.msra.mxu0 0.0
    %918 = vmatprep.subr.mxu0 0.0
    %919 = vmatpush1.msra.mxu0 0.0
    %920 = vmatprep.subr.mxu0 0.0
    %921 = vmatpush1.msra.mxu0 0.0
    %922 = vmatprep.subr.mxu0 0.0
    %923 = vmatpush1.msra.mxu0 0.0
    %924 = vmatprep.subr.mxu0 0.0
    %925 = vmatpush1.msra.mxu0 0.0
    %926 = vmatprep.mubr.f32.mxu0 0.0
    %927 = vmatmul.mubr.f32.gmra.mrb[0].mxu0 %v860
    %v928 = vpop.f32.mrb[0].mxu0
    %v929 = vadd.f32 0.0, %v928
    %v930 = vpop.f32.mrb[0].mxu0
    %931 = vmatprep.mubr.f32.mxu0 0.0
    %932 = vmatmul.mubr.f32.gmra.mrb[0].mxu0 %v861
    %v933 = vpop.f32.mrb[0].mxu0
    %v934 = vadd.f32 0.0, %v933
    %v935 = vpop.f32.mrb[0].mxu0
    %936 = vdwg.mxu0
    %v937 = vadd.f32 %v857, %v929
    %v938 = vadd.f32 %v858, %v934
    %939 = vst [vmem:[%s856] sm:$0xff] %v937
    %940 = vst [vmem:[%s856 + $0x8] sm:$0xff] %v938
    // Predicated region
    $region26: #{tpu_custom_call.1} parent=1 // pred_check
      _
    $region27: #{tpu_custom_call.1} parent=1 // pred_check_branch
      %942 = sbr.rel (0) target = $region29
    $region28: #{tpu_custom_call.1} parent=1 // pred_region
      %s944 = ssub.s32 512, 512
      %945 = vsyncadd [#allocation3], %s944
      %s946 = sshll.u32 [#allocation2], 4
      %s947 = int_to_ptr.vmem [resolvable:$true] %s946
      %952 = dma.vmem_to_hbm [thread:$0]  %s947, 512, %s5, [#allocation3], 128, 128, 8
    $region29: #{tpu_custom_call.1} parent=1 // pred_fallthru
      _
    // Predicated region
    $region30: #{tpu_custom_call.1} parent=1 // pred_check
      _
    $region31: #{tpu_custom_call.1} parent=1 // pred_check_branch
      %954 = sbr.rel (0) target = $region33
    $region32: #{tpu_custom_call.1} parent=1 // pred_region
      %955 = dma.done [#allocation3], 512
    $region33: #{tpu_custom_call.1} parent=1 // pred_fallthru
      _
    %956 = vsyncpa [#allocation3], 1

</llo_original>
